<compile_context>
chip_gen: v6e
topology: v6e:2x2x1
jax: 0.10.0
libtpu: 0.0.40
codegen_flags: <defaults>
</compile_context>

<pallas_src>
import functools

import jax
import jax.numpy as jnp
from jax.experimental import pallas as pl
from jax.experimental.pallas import tpu as pltpu


def _round_up(n, m):
    return -(-n // m) * m


def policy_kernel(x_ref, w1_ref, b1_ref, w2_ref, b2_ref, w3_ref, b3_ref, out_ref):
    # x block arrives pre-transposed and lane-dense: (in_pad, TILE_B).
    xt = x_ref[...]

    # Layer 1: relu(W1 @ x^T + b1)                       (hidden, TILE_B)
    a = jnp.dot(w1_ref[...], xt, preferred_element_type=jnp.float32) + b1_ref[...]
    a = jnp.maximum(a, 0.0)

    # Layer 2: relu(W2 @ a + b2)                         (hidden, TILE_B)
    a = jnp.dot(w2_ref[...], a, preferred_element_type=jnp.float32) + b2_ref[...]
    a = jnp.maximum(a, 0.0)

    # Layer 3: logits = W3 @ a + b3                      (out_dim, TILE_B)
    logits = jnp.dot(w3_ref[...], a, preferred_element_type=jnp.float32) + b3_ref[...]

    # Categorical(logits=...) normalization (reduction over out_dim = sublane
    # axis here, cheap XLU work).
    m = jnp.max(logits, axis=0, keepdims=True)
    lse = m + jnp.log(jnp.sum(jnp.exp(logits - m), axis=0, keepdims=True))

    # Fused output slab: rows [0:out_dim] = logits, rows [out_dim:] = log_probs.
    n_out = logits.shape[0]
    out_ref[0:n_out, :] = logits
    out_ref[n_out:, :] = logits - lse


def _choose_tile(batch, max_tile_b):
    """Pick a lane-aligned batch tile.  Keep >=2 grid steps when the batch is
    big enough so v7x's two TensorCores both get work; on v5e/v6e the single
    TC just sees larger (cheaper) tiles."""
    batch_r = _round_up(batch, 128)
    tile_b = max(128, min(max_tile_b, _round_up(pl.cdiv(batch_r, 2), 128)))
    batch_pad = _round_up(batch, tile_b)
    return tile_b, batch_pad


def _policy_pallas(x_tp, w1_p, b1, w2, b2, w3, b3, tile_b):
    """x_tp: (in_pad, batch_pad) f32 with in_pad % 8 == 0 and
    batch_pad % tile_b == 0.  Returns the fused (2*out_dim, batch_pad) slab."""
    in_pad, batch_pad = x_tp.shape
    hidden = w1_p.shape[0]
    out_dim = w3.shape[0]
    grid = (batch_pad // tile_b,)

    def resident(shape):
        # Constant block index across the grid -> DMA'd once, stays in VMEM.
        # (Review item "Buffered(1) on resident specs" skipped: saves only a
        #  few tens of KB and we have huge VMEM headroom here.)
        return pl.BlockSpec(shape, lambda i: (0, 0))

    flops = 2 * batch_pad * (in_pad * hidden + hidden * hidden + hidden * out_dim)
    out_rows_hbm = _round_up(2 * out_dim, 8)          # 8-sublane-tiled writeback
    bytes_accessed = 4 * (in_pad * batch_pad                    # lane-dense x^T
                          + out_rows_hbm * batch_pad            # fused output slab
                          + hidden * in_pad + hidden * hidden   # W1, W2
                          + _round_up(out_dim, 8) * hidden      # W3 (sublane padded)
                          + 3 * hidden)                         # biases (approx)
    cost = pl.CostEstimate(flops=flops,
                           transcendentals=batch_pad * (out_dim + 1),
                           bytes_accessed=bytes_accessed)

    return pl.pallas_call(
        policy_kernel,
        out_shape=jax.ShapeDtypeStruct((2 * out_dim, batch_pad), jnp.float32),
        grid=grid,
        in_specs=[
            pl.BlockSpec((in_pad, tile_b), lambda i: (0, i)),   # x^T (lane-dense, batch-tiled)
            resident((hidden, in_pad)),                          # W1
            resident((hidden, 1)),                               # b1
            resident((hidden, hidden)),                          # W2
            resident((hidden, 1)),                               # b2
            resident((out_dim, hidden)),                         # W3
            resident((out_dim, 1)),                              # b3
        ],
        out_specs=pl.BlockSpec((2 * out_dim, tile_b), lambda i: (0, i)),
        compiler_params=pltpu.CompilerParams(
            dimension_semantics=("parallel",)),
        cost_estimate=cost,
    )(x_tp, w1_p, b1[:, None], w2, b2[:, None], w3, b3[:, None])


@functools.partial(jax.jit, static_argnames=("max_tile_b",))
def policy_forward(x, params, max_tile_b=8192):
    """Standard-layout entry point.  x: (batch, in_dim).
    Returns (logits, log_probs), each (batch, out_dim) — the parameters of the
    Categorical distribution the PyTorch module returns."""
    w1, b1, w2, b2, w3, b3 = params          # PyTorch layout: (out, in), (out,)
    batch, in_dim = x.shape
    out_dim = w3.shape[0]
    in_pad = _round_up(in_dim, 8)
    tile_b, batch_pad = _choose_tile(batch, max_tile_b)

    # One pass: transpose + zero-pad to the lane-dense kernel layout.
    x_tp = jnp.pad(jnp.transpose(x.astype(jnp.float32)),
                   ((0, in_pad - in_dim), (0, batch_pad - batch)))
    w1_p = jnp.pad(w1, ((0, 0), (0, in_pad - in_dim)))

    out = _policy_pallas(x_tp, w1_p, b1, w2, b2, w3, b3, tile_b)
    # Back to the module's (batch, out_dim) layout; drop batch padding.
    return out[:out_dim, :batch].T, out[out_dim:, :batch].T


@functools.partial(jax.jit, static_argnames=("max_tile_b",))
def policy_forward_t(x_t, params, max_tile_b=8192):
    """Transposed entry point (avoids wrapper HBM transposes).
    x_t: (in_dim, batch).  Returns (logits_t, log_probs_t), each (out_dim, batch)
    — lane-dense slabs, convenient for PG log-prob gathers over the batch."""
    w1, b1, w2, b2, w3, b3 = params
    in_dim, batch = x_t.shape
    out_dim = w3.shape[0]
    in_pad = _round_up(in_dim, 8)
    tile_b, batch_pad = _choose_tile(batch, max_tile_b)

    x_tp = jnp.pad(x_t.astype(jnp.float32),
                   ((0, in_pad - in_dim), (0, batch_pad - batch)))
    w1_p = jnp.pad(w1, ((0, 0), (0, in_pad - in_dim)))

    out = _policy_pallas(x_tp, w1_p, b1, w2, b2, w3, b3, tile_b)
    return out[:out_dim, :batch], out[out_dim:, :batch]


def init_params(key, input_dim, hidden, output_dim):
    """Deterministic init mimicking nn.Linear (uniform +-1/sqrt(fan_in)),
    stored in PyTorch layout: W (out_features, in_features), b (out_features,)."""
    ks = jax.random.split(key, 6)

    def linear(kw, kb, fan_in, fan_out):
        bound = float(fan_in) ** -0.5
        w = jax.random.uniform(kw, (fan_out, fan_in), jnp.float32, -bound, bound)
        b = jax.random.uniform(kb, (fan_out,), jnp.float32, -bound, bound)
        return w, b

    w1, b1 = linear(ks[0], ks[1], input_dim, hidden)
    w2, b2 = linear(ks[2], ks[3], hidden, hidden)
    w3, b3 = linear(ks[4], ks[5], hidden, output_dim)
    return (w1, b1, w2, b2, w3, b3)


if __name__ == "__main__":
    # Small shapes consistent with a typical policy-gradient env
    # (e.g. CartPole: observation_space.shape[0] = 4, action_space.n = 2).
    batch = 8
    input_dim = 4
    hidden = 64
    output_dim = 2

    key = jax.random.PRNGKey(0)
    kx, kp = jax.random.split(key)
    x = jax.random.normal(kx, (batch, input_dim), jnp.float32)
    params = init_params(kp, input_dim, hidden, output_dim)

    logits, log_probs = policy_forward(x, params)
    jax.block_until_ready((logits, log_probs))

    # Pure-JAX reference (PyTorch semantics: x @ W.T + b).
    w1, b1, w2, b2, w3, b3 = params
    a = jnp.maximum(x @ w1.T + b1, 0.0)
    a = jnp.maximum(a @ w2.T + b2, 0.0)
    ref_logits = a @ w3.T + b3
    ref_logprobs = ref_logits - jax.scipy.special.logsumexp(
        ref_logits, axis=-1, keepdims=True)

    assert logits.shape == (batch, output_dim)
    assert log_probs.shape == (batch, output_dim)
    assert jnp.allclose(logits, ref_logits, atol=2e-4, rtol=2e-4)
    assert jnp.allclose(log_probs, ref_logprobs, atol=2e-4, rtol=2e-4)
    # Probabilities sum to 1 (valid Categorical).
    assert jnp.allclose(jnp.sum(jnp.exp(log_probs), axis=-1), 1.0, atol=1e-5)

    # Transposed entry point (no wrapper transposes) agrees too.
    logits_t, logprobs_t = policy_forward_t(x.T, params)
    jax.block_until_ready((logits_t, logprobs_t))
    assert jnp.allclose(logits_t.T, ref_logits, atol=2e-4, rtol=2e-4)
    assert jnp.allclose(logprobs_t.T, ref_logprobs, atol=2e-4, rtol=2e-4)

    # TODO(synk): Categorical .sample() could be fused in-kernel via
    # pltpu.prng_seed/prng_random_bits (Gumbel-argmax); left to the caller here.
    print("KERNEL_OK")
</pallas_src>

<mosaic_0001>
module attributes {stable_mosaic.version = 11 : i64} {
  func.func @policy_kernel(%arg0: i32, %arg1: memref<8x128xf32, #tpu.memory_space<vmem>>, %arg2: memref<64x8xf32, #tpu.memory_space<vmem>>, %arg3: memref<64x1xf32, #tpu.memory_space<vmem>>, %arg4: memref<64x64xf32, #tpu.memory_space<vmem>>, %arg5: memref<64x1xf32, #tpu.memory_space<vmem>>, %arg6: memref<2x64xf32, #tpu.memory_space<vmem>>, %arg7: memref<2x1xf32, #tpu.memory_space<vmem>>, %arg8: memref<4x128xf32, #tpu.memory_space<vmem>>) attributes {dimension_semantics = [#tpu.dimension_semantics<parallel>], iteration_bounds = array<i64: 1>, scalar_prefetch = 0 : i64, scratch_operands = 0 : i64, tpu.core_type = #tpu.core_type<tc>, window_params = [{transform_indices = @transform_0, window_bounds = array<i64: 8, 128>}, {pipeline_mode = #tpu.pipeline_mode<synchronous>, transform_indices = @transform_1, window_bounds = array<i64: 64, 8>}, {pipeline_mode = #tpu.pipeline_mode<synchronous>, transform_indices = @transform_2, window_bounds = array<i64: 64, 1>}, {pipeline_mode = #tpu.pipeline_mode<synchronous>, transform_indices = @transform_3, window_bounds = array<i64: 64, 64>}, {pipeline_mode = #tpu.pipeline_mode<synchronous>, transform_indices = @transform_4, window_bounds = array<i64: 64, 1>}, {pipeline_mode = #tpu.pipeline_mode<synchronous>, transform_indices = @transform_5, window_bounds = array<i64: 2, 64>}, {pipeline_mode = #tpu.pipeline_mode<synchronous>, transform_indices = @transform_6, window_bounds = array<i64: 2, 1>}, {transform_indices = @transform_7, window_bounds = array<i64: 4, 128>}]} {
    %c0 = arith.constant 0 : index
    %c0_0 = arith.constant 0 : index
    %0 = vector.load %arg1[%c0, %c0_0] : memref<8x128xf32, #tpu.memory_space<vmem>>, vector<8x128xf32>
    %c0_1 = arith.constant 0 : index
    %c0_2 = arith.constant 0 : index
    %1 = vector.load %arg2[%c0_1, %c0_2] : memref<64x8xf32, #tpu.memory_space<vmem>>, vector<64x8xf32>
    %cst = arith.constant dense<0.000000e+00> : vector<64x128xf32>
    %2 = tpu.matmul %1, %0, %cst {dimension_numbers = #tpu.dot_dimension_numbers<[1], [0], [0], [1], [0, 0, 1, 1], [], []>} : vector<64x8xf32>, vector<8x128xf32>, vector<64x128xf32> -> vector<64x128xf32>
    %c0_3 = arith.constant 0 : index
    %c0_4 = arith.constant 0 : index
    %3 = vector.load %arg3[%c0_3, %c0_4] : memref<64x1xf32, #tpu.memory_space<vmem>>, vector<64x1xf32>
    %4 = vector.broadcast %3 : vector<64x1xf32> to vector<64x128xf32>
    %5 = arith.addf %2, %4 : vector<64x128xf32>
    %cst_5 = arith.constant 0.000000e+00 : f32
    %6 = vector.broadcast %cst_5 : f32 to vector<64x128xf32>
    %7 = arith.maximumf %5, %6 : vector<64x128xf32>
    %c0_6 = arith.constant 0 : index
    %c0_7 = arith.constant 0 : index
    %8 = vector.load %arg4[%c0_6, %c0_7] : memref<64x64xf32, #tpu.memory_space<vmem>>, vector<64x64xf32>
    %cst_8 = arith.constant dense<0.000000e+00> : vector<64x128xf32>
    %9 = tpu.matmul %8, %7, %cst_8 {dimension_numbers = #tpu.dot_dimension_numbers<[1], [0], [0], [1], [0, 0, 1, 1], [], []>} : vector<64x64xf32>, vector<64x128xf32>, vector<64x128xf32> -> vector<64x128xf32>
    %c0_9 = arith.constant 0 : index
    %c0_10 = arith.constant 0 : index
    %10 = vector.load %arg5[%c0_9, %c0_10] : memref<64x1xf32, #tpu.memory_space<vmem>>, vector<64x1xf32>
    %11 = vector.broadcast %10 : vector<64x1xf32> to vector<64x128xf32>
    %12 = arith.addf %9, %11 : vector<64x128xf32>
    %cst_11 = arith.constant 0.000000e+00 : f32
    %13 = vector.broadcast %cst_11 : f32 to vector<64x128xf32>
    %14 = arith.maximumf %12, %13 : vector<64x128xf32>
    %c0_12 = arith.constant 0 : index
    %c0_13 = arith.constant 0 : index
    %15 = vector.load %arg6[%c0_12, %c0_13] : memref<2x64xf32, #tpu.memory_space<vmem>>, vector<2x64xf32>
    %cst_14 = arith.constant dense<0.000000e+00> : vector<2x128xf32>
    %16 = tpu.matmul %15, %14, %cst_14 {dimension_numbers = #tpu.dot_dimension_numbers<[1], [0], [0], [1], [0, 0, 1, 1], [], []>} : vector<2x64xf32>, vector<64x128xf32>, vector<2x128xf32> -> vector<2x128xf32>
    %c0_15 = arith.constant 0 : index
    %c0_16 = arith.constant 0 : index
    %17 = vector.load %arg7[%c0_15, %c0_16] : memref<2x1xf32, #tpu.memory_space<vmem>>, vector<2x1xf32>
    %18 = vector.broadcast %17 : vector<2x1xf32> to vector<2x128xf32>
    %19 = arith.addf %16, %18 : vector<2x128xf32>
    %cst_17 = arith.constant dense<0xFF800000> : vector<128xf32>
    %20 = vector.multi_reduction <maximumf>, %19, %cst_17 [0] : vector<2x128xf32> to vector<128xf32>
    %21 = vector.shape_cast %20 : vector<128xf32> to vector<1x128xf32>
    %22 = vector.broadcast %21 : vector<1x128xf32> to vector<2x128xf32>
    %23 = arith.subf %19, %22 : vector<2x128xf32>
    %24 = math.exp %23 : vector<2x128xf32>
    %cst_18 = arith.constant dense<0.000000e+00> : vector<128xf32>
    %25 = vector.multi_reduction <add>, %24, %cst_18 [0] : vector<2x128xf32> to vector<128xf32>
    %26 = vector.shape_cast %25 : vector<128xf32> to vector<1x128xf32>
    %27 = math.log %26 : vector<1x128xf32>
    %28 = arith.addf %21, %27 : vector<1x128xf32>
    %c0_19 = arith.constant 0 : index
    %c0_20 = arith.constant 0 : index
    %29 = vector.load %arg8[%c0_19, %c0_20] : memref<4x128xf32, #tpu.memory_space<vmem>>, vector<2x128xf32>
    tpu.vector_store %arg8[%c0_19, %c0_20], %19 {strides = array<i32>} : memref<4x128xf32, #tpu.memory_space<vmem>>, vector<2x128xf32>,
    %30 = vector.broadcast %28 : vector<1x128xf32> to vector<2x128xf32>
    %31 = arith.subf %19, %30 : vector<2x128xf32>
    %c2 = arith.constant 2 : index
    %c0_21 = arith.constant 0 : index
    %32 = vector.load %arg8[%c2, %c0_21] : memref<4x128xf32, #tpu.memory_space<vmem>>, vector<2x128xf32>
    tpu.vector_store %arg8[%c2, %c0_21], %31 {strides = array<i32>} : memref<4x128xf32, #tpu.memory_space<vmem>>, vector<2x128xf32>,
    return
  }
  func.func @transform_0(%arg0: i32) -> (i32, i32) {
    %c0_i32 = arith.constant 0 : i32
    %c0_i32_0 = arith.constant 0 : i32
    return %c0_i32, %arg0 : i32, i32
  }
  func.func @transform_1(%arg0: i32) -> (i32, i32) {
    %c0_i32 = arith.constant 0 : i32
    %c0_i32_0 = arith.constant 0 : i32
    %c0_i32_1 = arith.constant 0 : i32
    return %c0_i32, %c0_i32_0 : i32, i32
  }
  func.func @transform_2(%arg0: i32) -> (i32, i32) {
    %c0_i32 = arith.constant 0 : i32
    %c0_i32_0 = arith.constant 0 : i32
    %c0_i32_1 = arith.constant 0 : i32
    return %c0_i32, %c0_i32_0 : i32, i32
  }
  func.func @transform_3(%arg0: i32) -> (i32, i32) {
    %c0_i32 = arith.constant 0 : i32
    %c0_i32_0 = arith.constant 0 : i32
    %c0_i32_1 = arith.constant 0 : i32
    return %c0_i32, %c0_i32_0 : i32, i32
  }
  func.func @transform_4(%arg0: i32) -> (i32, i32) {
    %c0_i32 = arith.constant 0 : i32
    %c0_i32_0 = arith.constant 0 : i32
    %c0_i32_1 = arith.constant 0 : i32
    return %c0_i32, %c0_i32_0 : i32, i32
  }
  func.func @transform_5(%arg0: i32) -> (i32, i32) {
    %c0_i32 = arith.constant 0 : i32
    %c0_i32_0 = arith.constant 0 : i32
    %c0_i32_1 = arith.constant 0 : i32
    return %c0_i32, %c0_i32_0 : i32, i32
  }
  func.func @transform_6(%arg0: i32) -> (i32, i32) {
    %c0_i32 = arith.constant 0 : i32
    %c0_i32_0 = arith.constant 0 : i32
    %c0_i32_1 = arith.constant 0 : i32
    return %c0_i32, %c0_i32_0 : i32, i32
  }
  func.func @transform_7(%arg0: i32) -> (i32, i32) {
    %c0_i32 = arith.constant 0 : i32
    %c0_i32_0 = arith.constant 0 : i32
    return %c0_i32, %arg0 : i32, i32
  }
}

</mosaic_0001>

<llo_original>
// kernel: policy_forward.1
$region0: #{policy_forward.1}
  #allocation0 [shape = 'u32[]', space=smem, size = 0x4, offset = 0x4, fixed_abs, tag = 'smem constant byte address 0x4 - core index']
  #allocation1 [shape = 'u32[144,128]{1,0:T(1,128)}', space=vmem, size = 0x12000, scoped, tag = 'internal scratch']
  %s0 = inlined_call_operand.vmem [shape: f32[8,128], index: 0, kind: input, shape index: {}]
  %s1 = inlined_call_operand.vmem [shape: f32[64,8], index: 1, kind: input, shape index: {}]
  %s2 = inlined_call_operand.vmem [shape: f32[64,1], index: 2, kind: input, shape index: {}]
  %s3 = inlined_call_operand.vmem [shape: f32[64,64], index: 3, kind: input, shape index: {}]
  %s4 = inlined_call_operand.vmem [shape: f32[64,1], index: 4, kind: input, shape index: {}]
  %s5 = inlined_call_operand.vmem [shape: f32[2,64], index: 5, kind: input, shape index: {}]
  %s6 = inlined_call_operand.vmem [shape: f32[2,1], index: 6, kind: input, shape index: {}]
  %s7 = inlined_call_operand.vmem [shape: f32[4,128], index: 7, kind: output, shape index: {}]
  %s8 = sld [smem:[#allocation0]]
  $region38: #{policy_forward.1} parent=0
    _
  %s10 = ssub.s32 1, %s8
  %s11 = scalar_select 0, %s10, %s8
  // Predicated region
  $region2: #{policy_forward.1} parent=0 // pred_check
    _
  $region3: #{policy_forward.1} parent=0 // pred_check_branch
    %13 = sbr.rel (0) target = $region5
  $region4: #{policy_forward.1} parent=0 // pred_region
    _
  $region5: #{policy_forward.1} parent=0 // pred_fallthru
    _
  // Predicated region
  $region6: #{policy_forward.1} parent=0 // pred_check
    _
  $region7: #{policy_forward.1} parent=0 // pred_check_branch
    %15 = sbr.rel (0) target = $region9
  $region8: #{policy_forward.1} parent=0 // pred_region
    _
  $region9: #{policy_forward.1} parent=0 // pred_fallthru
    _
  // Predicated region
  $region10: #{policy_forward.1} parent=0 // pred_check
    _
  $region11: #{policy_forward.1} parent=0 // pred_check_branch
    %17 = sbr.rel (0) target = $region13
  $region12: #{policy_forward.1} parent=0 // pred_region
    _
  $region13: #{policy_forward.1} parent=0 // pred_fallthru
    _
  // Predicated region
  $region14: #{policy_forward.1} parent=0 // pred_check
    _
  $region15: #{policy_forward.1} parent=0 // pred_check_branch
    %19 = sbr.rel (0) target = $region17
  $region16: #{policy_forward.1} parent=0 // pred_region
    _
  $region17: #{policy_forward.1} parent=0 // pred_fallthru
    _
  // Predicated region
  $region18: #{policy_forward.1} parent=0 // pred_check
    _
  $region19: #{policy_forward.1} parent=0 // pred_check_branch
    %21 = sbr.rel (0) target = $region21
  $region20: #{policy_forward.1} parent=0 // pred_region
    _
  $region21: #{policy_forward.1} parent=0 // pred_fallthru
    _
  // Predicated region
  $region22: #{policy_forward.1} parent=0 // pred_check
    _
  $region23: #{policy_forward.1} parent=0 // pred_check_branch
    %23 = sbr.rel (0) target = $region25
  $region24: #{policy_forward.1} parent=0 // pred_region
    _
  $region25: #{policy_forward.1} parent=0 // pred_fallthru
    _
  // Predicated region
  $region26: #{policy_forward.1} parent=0 // pred_check
    _
  $region27: #{policy_forward.1} parent=0 // pred_check_branch
    %25 = sbr.rel (0) target = $region29
  $region28: #{policy_forward.1} parent=0 // pred_region
    _
  $region29: #{policy_forward.1} parent=0 // pred_fallthru
    _
  %v26 = vld [vmem:[%s0] sm:$0xff]
  %v27 = vld [vmem:[%s1] sm:$0xff]
  %v28 = vld [vmem:[%s1 + $0x8] sm:$0xff]
  %v29 = vld [vmem:[%s1 + $0x10] sm:$0xff]
  %v30 = vld [vmem:[%s1 + $0x18] sm:$0xff]
  %v31 = vld [vmem:[%s1 + $0x20] sm:$0xff]
  %v32 = vld [vmem:[%s1 + $0x28] sm:$0xff]
  %v33 = vld [vmem:[%s1 + $0x30] sm:$0xff]
  %v34 = vld [vmem:[%s1 + $0x38] sm:$0xff]
  %v35 = vld [vmem:[%s2] sm:$0xff]
  %v36 = vld [vmem:[%s2 + $0x8] sm:$0xff]
  %v37 = vld [vmem:[%s2 + $0x10] sm:$0xff]
  %v38 = vld [vmem:[%s2 + $0x18] sm:$0xff]
  %v39 = vld [vmem:[%s2 + $0x20] sm:$0xff]
  %v40 = vld [vmem:[%s2 + $0x28] sm:$0xff]
  %v41 = vld [vmem:[%s2 + $0x30] sm:$0xff]
  %v42 = vld [vmem:[%s2 + $0x38] sm:$0xff]
  %44 = vset.pattern.permute.xlu0 0
  %45 = vperm.xlu0 %44, %v35
  %v46 = vpop.permute.xlu0 %45
  %49 = vset.pattern.permute.xlu0 0
  %50 = vperm.xlu0 %49, %v36
  %v51 = vpop.permute.xlu0 %50
  %54 = vset.pattern.permute.xlu0 0
  %55 = vperm.xlu0 %54, %v37
  %v56 = vpop.permute.xlu0 %55
  %59 = vset.pattern.permute.xlu0 0
  %60 = vperm.xlu0 %59, %v38
  %v61 = vpop.permute.xlu0 %60
  %64 = vset.pattern.permute.xlu0 0
  %65 = vperm.xlu0 %64, %v39
  %v66 = vpop.permute.xlu0 %65
  %69 = vset.pattern.permute.xlu0 0
  %70 = vperm.xlu0 %69, %v40
  %v71 = vpop.permute.xlu0 %70
  %74 = vset.pattern.permute.xlu0 0
  %75 = vperm.xlu0 %74, %v41
  %v76 = vpop.permute.xlu0 %75
  %79 = vset.pattern.permute.xlu0 0
  %80 = vperm.xlu0 %79, %v42
  %v81 = vpop.permute.xlu0 %80
  %vm83 = vcmask 64512
  %v85 = vsel %vm83, %v27, 0
  %v88 = vsel %vm83, %v28, 0
  %v91 = vsel %vm83, %v29, 0
  %v94 = vsel %vm83, %v30, 0
  %v97 = vsel %vm83, %v31, 0
  %v100 = vsel %vm83, %v32, 0
  %v103 = vsel %vm83, %v33, 0
  %v106 = vsel %vm83, %v34, 0
  %108 = vmatprep.subr.mxu0 0.0
  %109 = vmatpush1.msra.mxu0 0.0
  %110 = vmatprep.subr.mxu0 0.0
  %111 = vmatpush1.msra.mxu0 0.0
  %112 = vmatprep.subr.mxu0 0.0
  %113 = vmatpush1.msra.mxu0 0.0
  %114 = vmatprep.subr.mxu0 0.0
  %115 = vmatpush1.msra.mxu0 0.0
  %116 = vmatprep.subr.mxu0 0.0
  %117 = vmatpush1.msra.mxu0 0.0
  %118 = vmatprep.subr.mxu0 0.0
  %119 = vmatpush1.msra.mxu0 0.0
  %120 = vmatprep.subr.mxu0 0.0
  %121 = vmatpush1.msra.mxu0 0.0
  %122 = vmatprep.subr.mxu0 0.0
  %123 = vmatpush1.msra.mxu0 0.0
  %124 = vmatprep.subr.mxu0 0.0
  %125 = vmatpush1.msra.mxu0 0.0
  %126 = vmatprep.subr.mxu0 0.0
  %127 = vmatpush1.msra.mxu0 0.0
  %128 = vmatprep.subr.mxu0 0.0
  %129 = vmatpush1.msra.mxu0 0.0
  %130 = vmatprep.subr.mxu0 0.0
  %131 = vmatpush1.msra.mxu0 0.0
  %132 = vmatprep.subr.mxu0 0.0
  %133 = vmatpush1.msra.mxu0 0.0
  %134 = vmatprep.subr.mxu0 0.0
  %135 = vmatpush1.msra.mxu0 0.0
  %136 = vmatprep.subr.mxu0 0.0
  %137 = vmatpush1.msra.mxu0 0.0
  %138 = vmatprep.subr.mxu0 0.0
  %139 = vmatpush1.msra.mxu0 %v26
  %140 = vmatprep.subr.mxu0 0.0
  %141 = vmatpush2.msra.mxu0 0.0
  %142 = vmatprep.subr.mxu0 0.0
  %143 = vmatpush2.msra.mxu0 0.0
  %144 = vmatprep.subr.mxu0 0.0
  %145 = vmatpush2.msra.mxu0 0.0
  %146 = vmatprep.subr.mxu0 0.0
  %147 = vmatpush2.msra.mxu0 0.0
  %148 = vmatprep.subr.mxu0 0.0
  %149 = vmatpush2.msra.mxu0 0.0
  %150 = vmatprep.subr.mxu0 0.0
  %151 = vmatpush2.msra.mxu0 0.0
  %152 = vmatprep.subr.mxu0 0.0
  %153 = vmatpush2.msra.mxu0 0.0
  %154 = vmatprep.subr.mxu0 0.0
  %155 = vmatpush2.msra.mxu0 0.0
  %156 = vmatprep.subr.mxu0 0.0
  %157 = vmatpush2.msra.mxu0 0.0
  %158 = vmatprep.subr.mxu0 0.0
  %159 = vmatpush2.msra.mxu0 0.0
  %160 = vmatprep.subr.mxu0 0.0
  %161 = vmatpush2.msra.mxu0 0.0
  %162 = vmatprep.subr.mxu0 0.0
  %163 = vmatpush2.msra.mxu0 0.0
  %164 = vmatprep.subr.mxu0 0.0
  %165 = vmatpush2.msra.mxu0 0.0
  %166 = vmatprep.subr.mxu0 0.0
  %167 = vmatpush2.msra.mxu0 0.0
  %168 = vmatprep.subr.mxu0 0.0
  %169 = vmatpush2.msra.mxu0 0.0
  %170 = vmatprep.subr.mxu0 0.0
  %171 = vmatpush2.msra.mxu0 0.0
  %172 = vmatprep.mubr.f32.mxu0 0.0
  %173 = vmatmul.mubr.f32.gmra.mxu0 %v85
  %v174 = vpop.f32.mrf.mxu0
  %v175 = vadd.f32 %v46, %v174
  %v176 = vpop.f32.mrf.mxu0
  %177 = vmatprep.mubr.f32.mxu0 0.0
  %178 = vmatmul.mubr.f32.gmra.mxu0 %v88
  %v179 = vpop.f32.mrf.mxu0
  %v180 = vadd.f32 %v51, %v179
  %v181 = vpop.f32.mrf.mxu0
  %182 = vmatprep.mubr.f32.mxu0 0.0
  %183 = vmatmul.mubr.f32.gmra.mxu0 %v91
  %v184 = vpop.f32.mrf.mxu0
  %v185 = vadd.f32 %v56, %v184
  %v186 = vpop.f32.mrf.mxu0
  %187 = vmatprep.mubr.f32.mxu0 0.0
  %188 = vmatmul.mubr.f32.gmra.mxu0 %v94
  %v189 = vpop.f32.mrf.mxu0
  %v190 = vadd.f32 %v61, %v189
  %v191 = vpop.f32.mrf.mxu0
  %192 = vmatprep.mubr.f32.mxu0 0.0
  %193 = vmatmul.mubr.f32.gmra.mxu0 %v97
  %v194 = vpop.f32.mrf.mxu0
  %v195 = vadd.f32 %v66, %v194
  %v196 = vpop.f32.mrf.mxu0
  %197 = vmatprep.mubr.f32.mxu0 0.0
  %198 = vmatmul.mubr.f32.gmra.mxu0 %v100
  %v199 = vpop.f32.mrf.mxu0
  %v200 = vadd.f32 %v71, %v199
  %v201 = vpop.f32.mrf.mxu0
  %202 = vmatprep.mubr.f32.mxu0 0.0
  %203 = vmatmul.mubr.f32.gmra.mxu0 %v103
  %v204 = vpop.f32.mrf.mxu0
  %v205 = vadd.f32 %v76, %v204
  %v206 = vpop.f32.mrf.mxu0
  %207 = vmatprep.mubr.f32.mxu0 0.0
  %208 = vmatmul.mubr.f32.gmra.mxu0 %v106
  %v209 = vpop.f32.mrf.mxu0
  %v210 = vadd.f32 %v81, %v209
  %v211 = vpop.f32.mrf.mxu0
  %212 = vdwg.mxu0
  %v213 = vmax.f32 %v175, 0.0
  %v214 = vmax.f32 %v180, 0.0
  %v215 = vmax.f32 %v185, 0.0
  %v216 = vmax.f32 %v190, 0.0
  %v217 = vmax.f32 %v195, 0.0
  %v218 = vmax.f32 %v200, 0.0
  %v219 = vmax.f32 %v205, 0.0
  %v220 = vmax.f32 %v210, 0.0
  %v221 = vld [vmem:[%s3] sm:$0xff]
  %v222 = vld [vmem:[%s3 + $0x8] sm:$0xff]
  %v223 = vld [vmem:[%s3 + $0x10] sm:$0xff]
  %v224 = vld [vmem:[%s3 + $0x18] sm:$0xff]
  %v225 = vld [vmem:[%s3 + $0x20] sm:$0xff]
  %v226 = vld [vmem:[%s3 + $0x28] sm:$0xff]
  %v227 = vld [vmem:[%s3 + $0x30] sm:$0xff]
  %v228 = vld [vmem:[%s3 + $0x38] sm:$0xff]
  %v229 = vld [vmem:[%s4] sm:$0xff]
  %v230 = vld [vmem:[%s4 + $0x8] sm:$0xff]
  %v231 = vld [vmem:[%s4 + $0x10] sm:$0xff]
  %v232 = vld [vmem:[%s4 + $0x18] sm:$0xff]
  %v233 = vld [vmem:[%s4 + $0x20] sm:$0xff]
  %v234 = vld [vmem:[%s4 + $0x28] sm:$0xff]
  %v235 = vld [vmem:[%s4 + $0x30] sm:$0xff]
  %v236 = vld [vmem:[%s4 + $0x38] sm:$0xff]
  %238 = vset.pattern.permute.xlu0 0
  %239 = vperm.xlu0 %238, %v229
  %v240 = vpop.permute.xlu0 %239
  %243 = vset.pattern.permute.xlu0 0
  %244 = vperm.xlu0 %243, %v230
  %v245 = vpop.permute.xlu0 %244
  %248 = vset.pattern.permute.xlu0 0
  %249 = vperm.xlu0 %248, %v231
  %v250 = vpop.permute.xlu0 %249
  %253 = vset.pattern.permute.xlu0 0
  %254 = vperm.xlu0 %253, %v232
  %v255 = vpop.permute.xlu0 %254
  %258 = vset.pattern.permute.xlu0 0
  %259 = vperm.xlu0 %258, %v233
  %v260 = vpop.permute.xlu0 %259
  %263 = vset.pattern.permute.xlu0 0
  %264 = vperm.xlu0 %263, %v234
  %v265 = vpop.permute.xlu0 %264
  %268 = vset.pattern.permute.xlu0 0
  %269 = vperm.xlu0 %268, %v235
  %v270 = vpop.permute.xlu0 %269
  %273 = vset.pattern.permute.xlu0 0
  %274 = vperm.xlu0 %273, %v236
  %v275 = vpop.permute.xlu0 %274
  %vm277 = vcmask 523264
  %v279 = vsel %vm277, %v221, 0
  %v282 = vsel %vm277, %v222, 0
  %v285 = vsel %vm277, %v223, 0
  %v288 = vsel %vm277, %v224, 0
  %v291 = vsel %vm277, %v225, 0
  %v294 = vsel %vm277, %v226, 0
  %v297 = vsel %vm277, %v227, 0
  %v300 = vsel %vm277, %v228, 0
  %302 = vmatprep.subr.mxu0 0.0
  %303 = vmatpush1.msra.mxu0 0.0
  %304 = vmatprep.subr.mxu0 0.0
  %305 = vmatpush1.msra.mxu0 0.0
  %306 = vmatprep.subr.mxu0 0.0
  %307 = vmatpush1.msra.mxu0 0.0
  %308 = vmatprep.subr.mxu0 0.0
  %309 = vmatpush1.msra.mxu0 0.0
  %310 = vmatprep.subr.mxu0 0.0
  %311 = vmatpush1.msra.mxu0 0.0
  %312 = vmatprep.subr.mxu0 0.0
  %313 = vmatpush1.msra.mxu0 0.0
  %314 = vmatprep.subr.mxu0 0.0
  %315 = vmatpush1.msra.mxu0 0.0
  %316 = vmatprep.subr.mxu0 0.0
  %317 = vmatpush1.msra.mxu0 0.0
  %318 = vmatprep.subr.mxu0 0.0
  %319 = vmatpush1.msra.mxu0 %v220
  %320 = vmatprep.subr.mxu0 0.0
  %321 = vmatpush1.msra.mxu0 %v219
  %322 = vmatprep.subr.mxu0 0.0
  %323 = vmatpush1.msra.mxu0 %v218
  %324 = vmatprep.subr.mxu0 0.0
  %325 = vmatpush1.msra.mxu0 %v217
  %326 = vmatprep.subr.mxu0 0.0
  %327 = vmatpush1.msra.mxu0 %v216
  %328 = vmatprep.subr.mxu0 0.0
  %329 = vmatpush1.msra.mxu0 %v215
  %330 = vmatprep.subr.mxu0 0.0
  %331 = vmatpush1.msra.mxu0 %v214
  %332 = vmatprep.subr.mxu0 0.0
  %333 = vmatpush1.msra.mxu0 %v213
  %334 = vmatprep.subr.mxu0 0.0
  %335 = vmatpush2.msra.mxu0 0.0
  %336 = vmatprep.subr.mxu0 0.0
  %337 = vmatpush2.msra.mxu0 0.0
  %338 = vmatprep.subr.mxu0 0.0
  %339 = vmatpush2.msra.mxu0 0.0
  %340 = vmatprep.subr.mxu0 0.0
  %341 = vmatpush2.msra.mxu0 0.0
  %342 = vmatprep.subr.mxu0 0.0
  %343 = vmatpush2.msra.mxu0 0.0
  %344 = vmatprep.subr.mxu0 0.0
  %345 = vmatpush2.msra.mxu0 0.0
  %346 = vmatprep.subr.mxu0 0.0
  %347 = vmatpush2.msra.mxu0 0.0
  %348 = vmatprep.subr.mxu0 0.0
  %349 = vmatpush2.msra.mxu0 0.0
  %350 = vmatprep.subr.mxu0 0.0
  %351 = vmatpush2.msra.mxu0 0.0
  %352 = vmatprep.subr.mxu0 0.0
  %353 = vmatpush2.msra.mxu0 0.0
  %354 = vmatprep.subr.mxu0 0.0
  %355 = vmatpush2.msra.mxu0 0.0
  %356 = vmatprep.subr.mxu0 0.0
  %357 = vmatpush2.msra.mxu0 0.0
  %358 = vmatprep.subr.mxu0 0.0
  %359 = vmatpush2.msra.mxu0 0.0
  %360 = vmatprep.subr.mxu0 0.0
  %361 = vmatpush2.msra.mxu0 0.0
  %362 = vmatprep.subr.mxu0 0.0
  %363 = vmatpush2.msra.mxu0 0.0
  %364 = vmatprep.subr.mxu0 0.0
  %365 = vmatpush2.msra.mxu0 0.0
  %366 = vmatprep.mubr.f32.mxu0 0.0
  %367 = vmatmul.mubr.f32.gmra.mxu0 %v279
  %v368 = vpop.f32.mrf.mxu0
  %v369 = vadd.f32 %v240, %v368
  %v370 = vpop.f32.mrf.mxu0
  %371 = vmatprep.mubr.f32.mxu0 0.0
  %372 = vmatmul.mubr.f32.gmra.mxu0 %v282
  %v373 = vpop.f32.mrf.mxu0
  %v374 = vadd.f32 %v245, %v373
  %v375 = vpop.f32.mrf.mxu0
  %376 = vmatprep.mubr.f32.mxu0 0.0
  %377 = vmatmul.mubr.f32.gmra.mxu0 %v285
  %v378 = vpop.f32.mrf.mxu0
  %v379 = vadd.f32 %v250, %v378
  %v380 = vpop.f32.mrf.mxu0
  %381 = vmatprep.mubr.f32.mxu0 0.0
  %382 = vmatmul.mubr.f32.gmra.mxu0 %v288
  %v383 = vpop.f32.mrf.mxu0
  %v384 = vadd.f32 %v255, %v383
  %v385 = vpop.f32.mrf.mxu0
  %386 = vmatprep.mubr.f32.mxu0 0.0
  %387 = vmatmul.mubr.f32.gmra.mxu0 %v291
  %v388 = vpop.f32.mrf.mxu0
  %v389 = vadd.f32 %v260, %v388
  %v390 = vpop.f32.mrf.mxu0
  %391 = vmatprep.mubr.f32.mxu0 0.0
  %392 = vmatmul.mubr.f32.gmra.mxu0 %v294
  %v393 = vpop.f32.mrf.mxu0
  %v394 = vadd.f32 %v265, %v393
  %v395 = vpop.f32.mrf.mxu0
  %396 = vmatprep.mubr.f32.mxu0 0.0
  %397 = vmatmul.mubr.f32.gmra.mxu0 %v297
  %v398 = vpop.f32.mrf.mxu0
  %v399 = vadd.f32 %v270, %v398
  %v400 = vpop.f32.mrf.mxu0
  %401 = vmatprep.mubr.f32.mxu0 0.0
  %402 = vmatmul.mubr.f32.gmra.mxu0 %v300
  %v403 = vpop.f32.mrf.mxu0
  %v404 = vadd.f32 %v275, %v403
  %v405 = vpop.f32.mrf.mxu0
  %406 = vdwg.mxu0
  %v407 = vmax.f32 %v369, 0.0
  %v408 = vmax.f32 %v374, 0.0
  %v409 = vmax.f32 %v379, 0.0
  %v410 = vmax.f32 %v384, 0.0
  %v411 = vmax.f32 %v389, 0.0
  %v412 = vmax.f32 %v394, 0.0
  %v413 = vmax.f32 %v399, 0.0
  %v414 = vmax.f32 %v404, 0.0
  %v415 = vld [vmem:[%s5] sm:$0x3]
  %v416 = vld [vmem:[%s6] sm:$0x3]
  %418 = vset.pattern.permute.xlu0 0
  %419 = vperm.xlu0 %418, %v416
  %v420 = vpop.permute.xlu0 %419
  %v423 = vsel %vm277, %v415, 0
  %425 = vmatprep.subr.mxu0 0.0
  %426 = vmatpush1.msra.mxu0 0.0
  %427 = vmatprep.subr.mxu0 0.0
  %428 = vmatpush1.msra.mxu0 0.0
  %429 = vmatprep.subr.mxu0 0.0
  %430 = vmatpush1.msra.mxu0 0.0
  %431 = vmatprep.subr.mxu0 0.0
  %432 = vmatpush1.msra.mxu0 0.0
  %433 = vmatprep.subr.mxu0 0.0
  %434 = vmatpush1.msra.mxu0 0.0
  %435 = vmatprep.subr.mxu0 0.0
  %436 = vmatpush1.msra.mxu0 0.0
  %437 = vmatprep.subr.mxu0 0.0
  %438 = vmatpush1.msra.mxu0 0.0
  %439 = vmatprep.subr.mxu0 0.0
  %440 = vmatpush1.msra.mxu0 0.0
  %441 = vmatprep.subr.mxu0 0.0
  %442 = vmatpush1.msra.mxu0 %v414
  %443 = vmatprep.subr.mxu0 0.0
  %444 = vmatpush1.msra.mxu0 %v413
  %445 = vmatprep.subr.mxu0 0.0
  %446 = vmatpush1.msra.mxu0 %v412
  %447 = vmatprep.subr.mxu0 0.0
  %448 = vmatpush1.msra.mxu0 %v411
  %449 = vmatprep.subr.mxu0 0.0
  %450 = vmatpush1.msra.mxu0 %v410
  %451 = vmatprep.subr.mxu0 0.0
  %452 = vmatpush1.msra.mxu0 %v409
  %453 = vmatprep.subr.mxu0 0.0
  %454 = vmatpush1.msra.mxu0 %v408
  %455 = vmatprep.subr.mxu0 0.0
  %456 = vmatpush1.msra.mxu0 %v407
  %457 = vmatprep.subr.mxu0 0.0
  %458 = vmatpush2.msra.mxu0 0.0
  %459 = vmatprep.subr.mxu0 0.0
  %460 = vmatpush2.msra.mxu0 0.0
  %461 = vmatprep.subr.mxu0 0.0
  %462 = vmatpush2.msra.mxu0 0.0
  %463 = vmatprep.subr.mxu0 0.0
  %464 = vmatpush2.msra.mxu0 0.0
  %465 = vmatprep.subr.mxu0 0.0
  %466 = vmatpush2.msra.mxu0 0.0
  %467 = vmatprep.subr.mxu0 0.0
  %468 = vmatpush2.msra.mxu0 0.0
  %469 = vmatprep.subr.mxu0 0.0
  %470 = vmatpush2.msra.mxu0 0.0
  %471 = vmatprep.subr.mxu0 0.0
  %472 = vmatpush2.msra.mxu0 0.0
  %473 = vmatprep.subr.mxu0 0.0
  %474 = vmatpush2.msra.mxu0 0.0
  %475 = vmatprep.subr.mxu0 0.0
  %476 = vmatpush2.msra.mxu0 0.0
  %477 = vmatprep.subr.mxu0 0.0
  %478 = vmatpush2.msra.mxu0 0.0
  %479 = vmatprep.subr.mxu0 0.0
  %480 = vmatpush2.msra.mxu0 0.0
  %481 = vmatprep.subr.mxu0 0.0
  %482 = vmatpush2.msra.mxu0 0.0
  %483 = vmatprep.subr.mxu0 0.0
  %484 = vmatpush2.msra.mxu0 0.0
  %485 = vmatprep.subr.mxu0 0.0
  %486 = vmatpush2.msra.mxu0 0.0
  %487 = vmatprep.subr.mxu0 0.0
  %488 = vmatpush2.msra.mxu0 0.0
  %489 = vmatprep.mubr.f32.mxu0 0.0
  %490 = vmatmul.mubr.f32.gmra.mxu0 %v423
  %v491 = vpop.f32.mrf.mxu0
  %v492 = vadd.f32 %v420, %v491
  %v493 = vpop.f32.mrf.mxu0
  %494 = vdwg.mxu0
  %vm495 = vcmask 1041408
  %v496 = vsel %vm495, %v492, -inf
  %v497 = vrot.slane %v496, 4
  %v498 = vmax.f32 %v496, %v497
  %v499 = vrot.slane %v498, 2
  %v500 = vmax.f32 %v498, %v499
  %v501 = vrot.slane %v500, 1
  %v502 = vmax.f32 %v500, %v501
  %v503 = vsub.f32 %v492, %v502
  %v504 = vmul.f32 %v503, 1.442695
  %v505 = vpow.pop %v504
  %v506 = vsel %vm495, %v505, 0.0
  %v507 = vrot.slane %v506, 4
  %v508 = vadd.f32 %v506, %v507
  %v509 = vrot.slane %v508, 2
  %v510 = vadd.f32 %v508, %v509
  %v511 = vrot.slane %v510, 1
  %v512 = vadd.f32 %v510, %v511
  %v513 = vlog2.pop %v512
  %v514 = vmul.f32 %v513, 0.6931472
  %v515 = vadd.f32 %v502, %v514
  %516 = vst [vmem:[%s7] sm:$0x3] %v492
  %v517 = vsub.f32 %v492, %v515
  %518 = vst [vmem:[%s7 + $0x2] sm:$0x3] %v517
  // Predicated region
  $region30: #{policy_forward.1} parent=0 // pred_check
    _
  $region31: #{policy_forward.1} parent=0 // pred_check_branch
    %520 = sbr.rel (0) target = $region33
  $region32: #{policy_forward.1} parent=0 // pred_region
    _
  $region33: #{policy_forward.1} parent=0 // pred_fallthru
    _
  // Predicated region
  $region34: #{policy_forward.1} parent=0 // pred_check
    _
  $region35: #{policy_forward.1} parent=0 // pred_check_branch
    %522 = sbr.rel (0) target = $region37
  $region36: #{policy_forward.1} parent=0 // pred_region
    _
  $region37: #{policy_forward.1} parent=0 // pred_fallthru
    _

</llo_original>
